<compile_context>
chip_gen: v5e
topology: v5e:2x2
jax: 0.10.0
libtpu: 0.0.40
codegen_flags: <defaults>
</compile_context>

<pallas_src>
import jax
import jax.numpy as jnp
from jax.experimental import pallas as pl
from jax.experimental.pallas import tpu as pltpu


def _custom_softmax_kernel(x_ref, o_ref):
    # Upcast once; all compare/exp/sum work happens in f32.
    x = x_ref[...].astype(jnp.float32)
    mask = x != -jnp.inf
    maxes = jnp.max(x, axis=-1, keepdims=True)
    exps = jnp.exp(x - maxes)
    exps = jnp.where(mask, exps, 0.0)
    denom = jnp.sum(exps, axis=-1, keepdims=True) + jnp.float32(1e-9)
    inv = pl.reciprocal(denom, approx=False)  # one recip per row, then a bcast mul
    o_ref[...] = (exps * inv).astype(o_ref.dtype)


def _choose_row_tile(rows, cols, itemsize, target_block_bytes):
    """Rows per block targeting ~target_block_bytes, multiple of 8, <= rows."""
    row_bytes = max(cols * itemsize, 1)
    rt = max(int(target_block_bytes // row_bytes), 1)
    rt = max((rt // 8) * 8, 8)
    if rt >= rows:
        return rows  # single-block bypass; full dim is always a legal block dim
    return rt


def custom_softmax(x, *, target_block_bytes=2 << 20):
    """Masked softmax over the last axis of x (any leading shape)."""
    orig_shape = x.shape
    cols = orig_shape[-1]
    rows = 1
    for d in orig_shape[:-1]:
        rows *= d
    rows = max(rows, 1)
    x2d = x.reshape(rows, cols)

    itemsize = jnp.dtype(x.dtype).itemsize
    row_tile = _choose_row_tile(rows, cols, itemsize, target_block_bytes)
    grid = (pl.cdiv(rows, row_tile),)

    # Pallas double-buffers each operand: ~2x(in block) + 2x(out block).
    # Use f32 item size as a conservative bound (kernel computes in f32).
    block_bytes = row_tile * cols * max(itemsize, 4)
    vmem_limit = int(min(max(4 * block_bytes + (8 << 20), 32 << 20), 48 << 20))

    cost = pl.CostEstimate(
        flops=5 * rows * cols,
        transcendentals=rows * cols,
        bytes_accessed=2 * rows * cols * itemsize,
    )

    out2d = pl.pallas_call(
        _custom_softmax_kernel,
        out_shape=jax.ShapeDtypeStruct((rows, cols), x.dtype),
        grid_spec=pltpu.PrefetchScalarGridSpec(
            num_scalar_prefetch=0,
            grid=grid,
            in_specs=[pl.BlockSpec((row_tile, cols), lambda i: (i, 0))],
            out_specs=pl.BlockSpec((row_tile, cols), lambda i: (i, 0)),
        ),
        compiler_params=pltpu.CompilerParams(
            dimension_semantics=("parallel",),
            vmem_limit_bytes=vmem_limit,
        ),
        cost_estimate=cost,
    )(x2d)

    return out2d.reshape(orig_shape)


def _reference_softmax(x):
    """Pure-JAX reference mirroring the PyTorch forward."""
    xf = x.astype(jnp.float32)
    mask = xf != -jnp.inf
    maxes = jnp.max(xf, axis=-1, keepdims=True)
    exps = jnp.exp(xf - maxes)
    exps = jnp.where(mask, exps, 0.0)
    return (exps / (jnp.sum(exps, axis=-1, keepdims=True) + 1e-9)).astype(x.dtype)


if __name__ == "__main__":
    key = jax.random.PRNGKey(0)

    # Attention-logit-like input: (batch=2, heads=4, q_len=16, k_len=16),
    # with -inf entries on padded keys to exercise the masking path.
    x = jax.random.normal(key, (2, 4, 16, 16), dtype=jnp.float32)
    x = x.at[:, :, :, 12:].set(-jnp.inf)

    out = jax.block_until_ready(custom_softmax(x))
    ref = _reference_softmax(x)
    assert out.shape == x.shape
    assert jnp.allclose(out, ref, atol=1e-6, rtol=1e-6), "mismatch vs reference"
    assert jnp.all(out[:, :, :, 12:] == 0.0)

    # Second, ragged multi-block case (small target_block_bytes forces a
    # row-tiled grid with a clipped last block) to validate the tiling path.
    x2 = jax.random.normal(jax.random.PRNGKey(1), (2, 3, 50, 128), dtype=jnp.float32)
    x2 = x2.at[..., 100:].set(-jnp.inf)
    out2 = jax.block_until_ready(custom_softmax(x2, target_block_bytes=32 * 1024))
    ref2 = _reference_softmax(x2)
    assert out2.shape == x2.shape
    assert jnp.allclose(out2, ref2, atol=1e-6, rtol=1e-6), "mismatch on tiled path"
    assert jnp.all(out2[..., 100:] == 0.0)

    print("KERNEL_OK")
</pallas_src>

<mosaic_0001>
module attributes {stable_mosaic.version = 11 : i64} {
  func.func @_custom_softmax_kernel(%arg0: i32, %arg1: memref<128x16xf32, #tpu.memory_space<vmem>>, %arg2: memref<128x16xf32, #tpu.memory_space<vmem>>) attributes {dimension_semantics = [#tpu.dimension_semantics<parallel>], iteration_bounds = array<i64: 1>, scalar_prefetch = 0 : i64, scratch_operands = 0 : i64, tpu.core_type = #tpu.core_type<tc>, window_params = [{transform_indices = @transform_0, window_bounds = array<i64: 128, 16>}, {transform_indices = @transform_1, window_bounds = array<i64: 128, 16>}]} {
    %c0 = arith.constant 0 : index
    %c0_0 = arith.constant 0 : index
    %0 = vector.load %arg1[%c0, %c0_0] : memref<128x16xf32, #tpu.memory_space<vmem>>, vector<128x16xf32>
    %cst = arith.constant 0xFF800000 : f32
    %1 = vector.broadcast %cst : f32 to vector<128x16xf32>
    %2 = arith.cmpf one, %0, %1 : vector<128x16xf32>
    %cst_1 = arith.constant dense<0xFF800000> : vector<128xf32>
    %3 = vector.multi_reduction <maximumf>, %0, %cst_1 [1] : vector<128x16xf32> to vector<128xf32>
    %4 = vector.shape_cast %3 : vector<128xf32> to vector<128x1xf32>
    %5 = vector.broadcast %4 : vector<128x1xf32> to vector<128x16xf32>
    %6 = arith.subf %0, %5 : vector<128x16xf32>
    %7 = math.exp %6 : vector<128x16xf32>
    %cst_2 = arith.constant 0.000000e+00 : f32
    %8 = vector.broadcast %cst_2 : f32 to vector<128x16xf32>
    %9 = arith.select %2, %7, %8 : vector<128x16xi1>, vector<128x16xf32>
    %cst_3 = arith.constant dense<0.000000e+00> : vector<128xf32>
    %10 = vector.multi_reduction <add>, %9, %cst_3 [1] : vector<128x16xf32> to vector<128xf32>
    %11 = vector.shape_cast %10 : vector<128xf32> to vector<128x1xf32>
    %cst_4 = arith.constant 9.99999971E-10 : f32
    %12 = vector.broadcast %cst_4 : f32 to vector<128x1xf32>
    %13 = arith.addf %11, %12 : vector<128x1xf32>
    %14 = tpu.reciprocal %13 : vector<128x1xf32> -> vector<128x1xf32>
    %15 = vector.broadcast %14 : vector<128x1xf32> to vector<128x16xf32>
    %16 = arith.mulf %9, %15 : vector<128x16xf32>
    %c0_5 = arith.constant 0 : index
    %c0_6 = arith.constant 0 : index
    %17 = vector.load %arg2[%c0_5, %c0_6] : memref<128x16xf32, #tpu.memory_space<vmem>>, vector<128x16xf32>
    tpu.vector_store %arg2[%c0_5, %c0_6], %16 {strides = array<i32>} : memref<128x16xf32, #tpu.memory_space<vmem>>, vector<128x16xf32>,
    return
  }
  func.func @transform_0(%arg0: i32) -> (i32, i32) {
    %c0_i32 = arith.constant 0 : i32
    %c0_i32_0 = arith.constant 0 : i32
    return %arg0, %c0_i32 : i32, i32
  }
  func.func @transform_1(%arg0: i32) -> (i32, i32) {
    %c0_i32 = arith.constant 0 : i32
    %c0_i32_0 = arith.constant 0 : i32
    return %arg0, %c0_i32 : i32, i32
  }
}

</mosaic_0001>

<llo_original>
// kernel: tpu_custom_call.1
$region0: #{tpu_custom_call.1}
  #allocation0 [shape = 'u32[]', space=smem, size = 0x4, offset = 0x4, fixed_abs, tag = 'smem constant byte address 0x4 - core index']
  #allocation1 [shape = 'u32[72,128]{1,0:T(1,128)}', space=vmem, size = 0x9000, scoped, tag = 'internal scratch']
  %s0 = inlined_call_operand.vmem [shape: f32[128,16], index: 0, kind: input, shape index: {}]
  %s1 = inlined_call_operand.vmem [shape: f32[128,16], index: 1, kind: output, shape index: {}]
  %s2 = sld [smem:[#allocation0]]
  $region14: #{tpu_custom_call.1} parent=0
    _
  %s4 = ssub.s32 1, %s2
  %s5 = scalar_select 0, %s4, %s2
  // Predicated region
  $region2: #{tpu_custom_call.1} parent=0 // pred_check
    _
  $region3: #{tpu_custom_call.1} parent=0 // pred_check_branch
    %7 = sbr.rel (0) target = $region5
  $region4: #{tpu_custom_call.1} parent=0 // pred_region
    _
  $region5: #{tpu_custom_call.1} parent=0 // pred_fallthru
    _
  %v8 = vld [vmem:[%s0] sm:$0xff]
  %v9 = vld [vmem:[%s0 + $0x8] sm:$0xff]
  %v10 = vld [vmem:[%s0 + $0x10] sm:$0xff]
  %v11 = vld [vmem:[%s0 + $0x18] sm:$0xff]
  %v12 = vld [vmem:[%s0 + $0x20] sm:$0xff]
  %v13 = vld [vmem:[%s0 + $0x28] sm:$0xff]
  %v14 = vld [vmem:[%s0 + $0x30] sm:$0xff]
  %v15 = vld [vmem:[%s0 + $0x38] sm:$0xff]
  %v16 = vld [vmem:[%s0 + $0x40] sm:$0xff]
  %v17 = vld [vmem:[%s0 + $0x48] sm:$0xff]
  %v18 = vld [vmem:[%s0 + $0x50] sm:$0xff]
  %v19 = vld [vmem:[%s0 + $0x58] sm:$0xff]
  %v20 = vld [vmem:[%s0 + $0x60] sm:$0xff]
  %v21 = vld [vmem:[%s0 + $0x68] sm:$0xff]
  %v22 = vld [vmem:[%s0 + $0x70] sm:$0xff]
  %v23 = vld [vmem:[%s0 + $0x78] sm:$0xff]
  %vm24 = vcmp.ne.f32.partialorder %v8, -inf
  %vm25 = vcmp.ne.f32.partialorder %v9, -inf
  %vm26 = vcmp.ne.f32.partialorder %v10, -inf
  %vm27 = vcmp.ne.f32.partialorder %v11, -inf
  %vm28 = vcmp.ne.f32.partialorder %v12, -inf
  %vm29 = vcmp.ne.f32.partialorder %v13, -inf
  %vm30 = vcmp.ne.f32.partialorder %v14, -inf
  %vm31 = vcmp.ne.f32.partialorder %v15, -inf
  %vm32 = vcmp.ne.f32.partialorder %v16, -inf
  %vm33 = vcmp.ne.f32.partialorder %v17, -inf
  %vm34 = vcmp.ne.f32.partialorder %v18, -inf
  %vm35 = vcmp.ne.f32.partialorder %v19, -inf
  %vm36 = vcmp.ne.f32.partialorder %v20, -inf
  %vm37 = vcmp.ne.f32.partialorder %v21, -inf
  %vm38 = vcmp.ne.f32.partialorder %v22, -inf
  %vm39 = vcmp.ne.f32.partialorder %v23, -inf
  %vm40 = vcmask 130048
  %v41 = vsel %vm40, %v8, -inf
  %42 = vmax.xlane.f32.xlu0 %v41
  %v43 = vpop.xlane.xlu0 %42
  %v44 = vsel %vm40, %v9, -inf
  %45 = vmax.xlane.f32.xlu0 %v44
  %v46 = vpop.xlane.xlu0 %45
  %v47 = vsel %vm40, %v10, -inf
  %48 = vmax.xlane.f32.xlu0 %v47
  %v49 = vpop.xlane.xlu0 %48
  %v50 = vsel %vm40, %v11, -inf
  %51 = vmax.xlane.f32.xlu0 %v50
  %v52 = vpop.xlane.xlu0 %51
  %v53 = vsel %vm40, %v12, -inf
  %54 = vmax.xlane.f32.xlu0 %v53
  %v55 = vpop.xlane.xlu0 %54
  %v56 = vsel %vm40, %v13, -inf
  %57 = vmax.xlane.f32.xlu0 %v56
  %v58 = vpop.xlane.xlu0 %57
  %v59 = vsel %vm40, %v14, -inf
  %60 = vmax.xlane.f32.xlu0 %v59
  %v61 = vpop.xlane.xlu0 %60
  %v62 = vsel %vm40, %v15, -inf
  %63 = vmax.xlane.f32.xlu0 %v62
  %v64 = vpop.xlane.xlu0 %63
  %v65 = vsel %vm40, %v16, -inf
  %66 = vmax.xlane.f32.xlu0 %v65
  %v67 = vpop.xlane.xlu0 %66
  %v68 = vsel %vm40, %v17, -inf
  %69 = vmax.xlane.f32.xlu0 %v68
  %v70 = vpop.xlane.xlu0 %69
  %v71 = vsel %vm40, %v18, -inf
  %72 = vmax.xlane.f32.xlu0 %v71
  %v73 = vpop.xlane.xlu0 %72
  %v74 = vsel %vm40, %v19, -inf
  %75 = vmax.xlane.f32.xlu0 %v74
  %v76 = vpop.xlane.xlu0 %75
  %v77 = vsel %vm40, %v20, -inf
  %78 = vmax.xlane.f32.xlu0 %v77
  %v79 = vpop.xlane.xlu0 %78
  %v80 = vsel %vm40, %v21, -inf
  %81 = vmax.xlane.f32.xlu0 %v80
  %v82 = vpop.xlane.xlu0 %81
  %v83 = vsel %vm40, %v22, -inf
  %84 = vmax.xlane.f32.xlu0 %v83
  %v85 = vpop.xlane.xlu0 %84
  %v86 = vsel %vm40, %v23, -inf
  %87 = vmax.xlane.f32.xlu0 %v86
  %v88 = vpop.xlane.xlu0 %87
  %v89 = vsub.f32 %v8, %v43
  %v90 = vsub.f32 %v9, %v46
  %v91 = vsub.f32 %v10, %v49
  %v92 = vsub.f32 %v11, %v52
  %v93 = vsub.f32 %v12, %v55
  %v94 = vsub.f32 %v13, %v58
  %v95 = vsub.f32 %v14, %v61
  %v96 = vsub.f32 %v15, %v64
  %v97 = vsub.f32 %v16, %v67
  %v98 = vsub.f32 %v17, %v70
  %v99 = vsub.f32 %v18, %v73
  %v100 = vsub.f32 %v19, %v76
  %v101 = vsub.f32 %v20, %v79
  %v102 = vsub.f32 %v21, %v82
  %v103 = vsub.f32 %v22, %v85
  %v104 = vsub.f32 %v23, %v88
  %v105 = vmul.f32 %v89, 1.442695
  %v106 = vpow.pop %v105
  %v107 = vmul.f32 %v90, 1.442695
  %v108 = vpow.pop %v107
  %v109 = vmul.f32 %v91, 1.442695
  %v110 = vpow.pop %v109
  %v111 = vmul.f32 %v92, 1.442695
  %v112 = vpow.pop %v111
  %v113 = vmul.f32 %v93, 1.442695
  %v114 = vpow.pop %v113
  %v115 = vmul.f32 %v94, 1.442695
  %v116 = vpow.pop %v115
  %v117 = vmul.f32 %v95, 1.442695
  %v118 = vpow.pop %v117
  %v119 = vmul.f32 %v96, 1.442695
  %v120 = vpow.pop %v119
  %v121 = vmul.f32 %v97, 1.442695
  %v122 = vpow.pop %v121
  %v123 = vmul.f32 %v98, 1.442695
  %v124 = vpow.pop %v123
  %v125 = vmul.f32 %v99, 1.442695
  %v126 = vpow.pop %v125
  %v127 = vmul.f32 %v100, 1.442695
  %v128 = vpow.pop %v127
  %v129 = vmul.f32 %v101, 1.442695
  %v130 = vpow.pop %v129
  %v131 = vmul.f32 %v102, 1.442695
  %v132 = vpow.pop %v131
  %v133 = vmul.f32 %v103, 1.442695
  %v134 = vpow.pop %v133
  %v135 = vmul.f32 %v104, 1.442695
  %v136 = vpow.pop %v135
  %v137 = vsel %vm24, %v106, 0.0
  %v138 = vsel %vm25, %v108, 0.0
  %v139 = vsel %vm26, %v110, 0.0
  %v140 = vsel %vm27, %v112, 0.0
  %v141 = vsel %vm28, %v114, 0.0
  %v142 = vsel %vm29, %v116, 0.0
  %v143 = vsel %vm30, %v118, 0.0
  %v144 = vsel %vm31, %v120, 0.0
  %v145 = vsel %vm32, %v122, 0.0
  %v146 = vsel %vm33, %v124, 0.0
  %v147 = vsel %vm34, %v126, 0.0
  %v148 = vsel %vm35, %v128, 0.0
  %v149 = vsel %vm36, %v130, 0.0
  %v150 = vsel %vm37, %v132, 0.0
  %v151 = vsel %vm38, %v134, 0.0
  %v152 = vsel %vm39, %v136, 0.0
  %v153 = vsel %vm40, %v137, 0.0
  %154 = vadd.xlane.f32.xlu0 %v153
  %v155 = vpop.xlane.xlu0 %154
  %v156 = vsel %vm40, %v138, 0.0
  %157 = vadd.xlane.f32.xlu0 %v156
  %v158 = vpop.xlane.xlu0 %157
  %v159 = vsel %vm40, %v139, 0.0
  %160 = vadd.xlane.f32.xlu0 %v159
  %v161 = vpop.xlane.xlu0 %160
  %v162 = vsel %vm40, %v140, 0.0
  %163 = vadd.xlane.f32.xlu0 %v162
  %v164 = vpop.xlane.xlu0 %163
  %v165 = vsel %vm40, %v141, 0.0
  %166 = vadd.xlane.f32.xlu0 %v165
  %v167 = vpop.xlane.xlu0 %166
  %v168 = vsel %vm40, %v142, 0.0
  %169 = vadd.xlane.f32.xlu0 %v168
  %v170 = vpop.xlane.xlu0 %169
  %v171 = vsel %vm40, %v143, 0.0
  %172 = vadd.xlane.f32.xlu0 %v171
  %v173 = vpop.xlane.xlu0 %172
  %v174 = vsel %vm40, %v144, 0.0
  %175 = vadd.xlane.f32.xlu0 %v174
  %v176 = vpop.xlane.xlu0 %175
  %v177 = vsel %vm40, %v145, 0.0
  %178 = vadd.xlane.f32.xlu0 %v177
  %v179 = vpop.xlane.xlu0 %178
  %v180 = vsel %vm40, %v146, 0.0
  %181 = vadd.xlane.f32.xlu0 %v180
  %v182 = vpop.xlane.xlu0 %181
  %v183 = vsel %vm40, %v147, 0.0
  %184 = vadd.xlane.f32.xlu0 %v183
  %v185 = vpop.xlane.xlu0 %184
  %v186 = vsel %vm40, %v148, 0.0
  %187 = vadd.xlane.f32.xlu0 %v186
  %v188 = vpop.xlane.xlu0 %187
  %v189 = vsel %vm40, %v149, 0.0
  %190 = vadd.xlane.f32.xlu0 %v189
  %v191 = vpop.xlane.xlu0 %190
  %v192 = vsel %vm40, %v150, 0.0
  %193 = vadd.xlane.f32.xlu0 %v192
  %v194 = vpop.xlane.xlu0 %193
  %v195 = vsel %vm40, %v151, 0.0
  %196 = vadd.xlane.f32.xlu0 %v195
  %v197 = vpop.xlane.xlu0 %196
  %v198 = vsel %vm40, %v152, 0.0
  %199 = vadd.xlane.f32.xlu0 %v198
  %v200 = vpop.xlane.xlu0 %199
  %v201 = vadd.f32 %v155, 1e-09
  %v202 = vadd.f32 %v158, 1e-09
  %v203 = vadd.f32 %v161, 1e-09
  %v204 = vadd.f32 %v164, 1e-09
  %v205 = vadd.f32 %v167, 1e-09
  %v206 = vadd.f32 %v170, 1e-09
  %v207 = vadd.f32 %v173, 1e-09
  %v208 = vadd.f32 %v176, 1e-09
  %v209 = vadd.f32 %v179, 1e-09
  %v210 = vadd.f32 %v182, 1e-09
  %v211 = vadd.f32 %v185, 1e-09
  %v212 = vadd.f32 %v188, 1e-09
  %v213 = vadd.f32 %v191, 1e-09
  %v214 = vadd.f32 %v194, 1e-09
  %v215 = vadd.f32 %v197, 1e-09
  %v216 = vadd.f32 %v200, 1e-09
  %v217 = vrcp.pop %v201
  %v218 = vmul.f32 %v201, %v217
  %v219 = vsub.f32 1.0, %v218
  %v220 = vmul.f32 %v217, %v219
  %v221 = vadd.f32 %v217, %v220
  %vm222 = vweird.f32 %v201
  %vm223 = vweird.f32 %v217
  %vm224 = vmor %vm222, %vm223
  %v225 = vsel %vm224, %v217, %v221
  %v226 = vand.u32 2147483647, %v201
  %vm227 = vcmp.eq.f32.partialorder %v226, 8.507059e+37
  %v228 = vand.u32 %v201, 2147483648
  %v229 = vor.u32 1.1754944e-38, %v228
  %v230 = vsel %vm227, %v229, %v225
  %v231 = vrcp.pop %v202
  %v232 = vmul.f32 %v202, %v231
  %v233 = vsub.f32 1.0, %v232
  %v234 = vmul.f32 %v231, %v233
  %v235 = vadd.f32 %v231, %v234
  %vm236 = vweird.f32 %v202
  %vm237 = vweird.f32 %v231
  %vm238 = vmor %vm236, %vm237
  %v239 = vsel %vm238, %v231, %v235
  %v240 = vand.u32 2147483647, %v202
  %vm241 = vcmp.eq.f32.partialorder %v240, 8.507059e+37
  %v242 = vand.u32 %v202, 2147483648
  %v243 = vor.u32 1.1754944e-38, %v242
  %v244 = vsel %vm241, %v243, %v239
  %v245 = vrcp.pop %v203
  %v246 = vmul.f32 %v203, %v245
  %v247 = vsub.f32 1.0, %v246
  %v248 = vmul.f32 %v245, %v247
  %v249 = vadd.f32 %v245, %v248
  %vm250 = vweird.f32 %v203
  %vm251 = vweird.f32 %v245
  %vm252 = vmor %vm250, %vm251
  %v253 = vsel %vm252, %v245, %v249
  %v254 = vand.u32 2147483647, %v203
  %vm255 = vcmp.eq.f32.partialorder %v254, 8.507059e+37
  %v256 = vand.u32 %v203, 2147483648
  %v257 = vor.u32 1.1754944e-38, %v256
  %v258 = vsel %vm255, %v257, %v253
  %v259 = vrcp.pop %v204
  %v260 = vmul.f32 %v204, %v259
  %v261 = vsub.f32 1.0, %v260
  %v262 = vmul.f32 %v259, %v261
  %v263 = vadd.f32 %v259, %v262
  %vm264 = vweird.f32 %v204
  %vm265 = vweird.f32 %v259
  %vm266 = vmor %vm264, %vm265
  %v267 = vsel %vm266, %v259, %v263
  %v268 = vand.u32 2147483647, %v204
  %vm269 = vcmp.eq.f32.partialorder %v268, 8.507059e+37
  %v270 = vand.u32 %v204, 2147483648
  %v271 = vor.u32 1.1754944e-38, %v270
  %v272 = vsel %vm269, %v271, %v267
  %v273 = vrcp.pop %v205
  %v274 = vmul.f32 %v205, %v273
  %v275 = vsub.f32 1.0, %v274
  %v276 = vmul.f32 %v273, %v275
  %v277 = vadd.f32 %v273, %v276
  %vm278 = vweird.f32 %v205
  %vm279 = vweird.f32 %v273
  %vm280 = vmor %vm278, %vm279
  %v281 = vsel %vm280, %v273, %v277
  %v282 = vand.u32 2147483647, %v205
  %vm283 = vcmp.eq.f32.partialorder %v282, 8.507059e+37
  %v284 = vand.u32 %v205, 2147483648
  %v285 = vor.u32 1.1754944e-38, %v284
  %v286 = vsel %vm283, %v285, %v281
  %v287 = vrcp.pop %v206
  %v288 = vmul.f32 %v206, %v287
  %v289 = vsub.f32 1.0, %v288
  %v290 = vmul.f32 %v287, %v289
  %v291 = vadd.f32 %v287, %v290
  %vm292 = vweird.f32 %v206
  %vm293 = vweird.f32 %v287
  %vm294 = vmor %vm292, %vm293
  %v295 = vsel %vm294, %v287, %v291
  %v296 = vand.u32 2147483647, %v206
  %vm297 = vcmp.eq.f32.partialorder %v296, 8.507059e+37
  %v298 = vand.u32 %v206, 2147483648
  %v299 = vor.u32 1.1754944e-38, %v298
  %v300 = vsel %vm297, %v299, %v295
  %v301 = vrcp.pop %v207
  %v302 = vmul.f32 %v207, %v301
  %v303 = vsub.f32 1.0, %v302
  %v304 = vmul.f32 %v301, %v303
  %v305 = vadd.f32 %v301, %v304
  %vm306 = vweird.f32 %v207
  %vm307 = vweird.f32 %v301
  %vm308 = vmor %vm306, %vm307
  %v309 = vsel %vm308, %v301, %v305
  %v310 = vand.u32 2147483647, %v207
  %vm311 = vcmp.eq.f32.partialorder %v310, 8.507059e+37
  %v312 = vand.u32 %v207, 2147483648
  %v313 = vor.u32 1.1754944e-38, %v312
  %v314 = vsel %vm311, %v313, %v309
  %v315 = vrcp.pop %v208
  %v316 = vmul.f32 %v208, %v315
  %v317 = vsub.f32 1.0, %v316
  %v318 = vmul.f32 %v315, %v317
  %v319 = vadd.f32 %v315, %v318
  %vm320 = vweird.f32 %v208
  %vm321 = vweird.f32 %v315
  %vm322 = vmor %vm320, %vm321
  %v323 = vsel %vm322, %v315, %v319
  %v324 = vand.u32 2147483647, %v208
  %vm325 = vcmp.eq.f32.partialorder %v324, 8.507059e+37
  %v326 = vand.u32 %v208, 2147483648
  %v327 = vor.u32 1.1754944e-38, %v326
  %v328 = vsel %vm325, %v327, %v323
  %v329 = vrcp.pop %v209
  %v330 = vmul.f32 %v209, %v329
  %v331 = vsub.f32 1.0, %v330
  %v332 = vmul.f32 %v329, %v331
  %v333 = vadd.f32 %v329, %v332
  %vm334 = vweird.f32 %v209
  %vm335 = vweird.f32 %v329
  %vm336 = vmor %vm334, %vm335
  %v337 = vsel %vm336, %v329, %v333
  %v338 = vand.u32 2147483647, %v209
  %vm339 = vcmp.eq.f32.partialorder %v338, 8.507059e+37
  %v340 = vand.u32 %v209, 2147483648
  %v341 = vor.u32 1.1754944e-38, %v340
  %v342 = vsel %vm339, %v341, %v337
  %v343 = vrcp.pop %v210
  %v344 = vmul.f32 %v210, %v343
  %v345 = vsub.f32 1.0, %v344
  %v346 = vmul.f32 %v343, %v345
  %v347 = vadd.f32 %v343, %v346
  %vm348 = vweird.f32 %v210
  %vm349 = vweird.f32 %v343
  %vm350 = vmor %vm348, %vm349
  %v351 = vsel %vm350, %v343, %v347
  %v352 = vand.u32 2147483647, %v210
  %vm353 = vcmp.eq.f32.partialorder %v352, 8.507059e+37
  %v354 = vand.u32 %v210, 2147483648
  %v355 = vor.u32 1.1754944e-38, %v354
  %v356 = vsel %vm353, %v355, %v351
  %v357 = vrcp.pop %v211
  %v358 = vmul.f32 %v211, %v357
  %v359 = vsub.f32 1.0, %v358
  %v360 = vmul.f32 %v357, %v359
  %v361 = vadd.f32 %v357, %v360
  %vm362 = vweird.f32 %v211
  %vm363 = vweird.f32 %v357
  %vm364 = vmor %vm362, %vm363
  %v365 = vsel %vm364, %v357, %v361
  %v366 = vand.u32 2147483647, %v211
  %vm367 = vcmp.eq.f32.partialorder %v366, 8.507059e+37
  %v368 = vand.u32 %v211, 2147483648
  %v369 = vor.u32 1.1754944e-38, %v368
  %v370 = vsel %vm367, %v369, %v365
  %v371 = vrcp.pop %v212
  %v372 = vmul.f32 %v212, %v371
  %v373 = vsub.f32 1.0, %v372
  %v374 = vmul.f32 %v371, %v373
  %v375 = vadd.f32 %v371, %v374
  %vm376 = vweird.f32 %v212
  %vm377 = vweird.f32 %v371
  %vm378 = vmor %vm376, %vm377
  %v379 = vsel %vm378, %v371, %v375
  %v380 = vand.u32 2147483647, %v212
  %vm381 = vcmp.eq.f32.partialorder %v380, 8.507059e+37
  %v382 = vand.u32 %v212, 2147483648
  %v383 = vor.u32 1.1754944e-38, %v382
  %v384 = vsel %vm381, %v383, %v379
  %v385 = vrcp.pop %v213
  %v386 = vmul.f32 %v213, %v385
  %v387 = vsub.f32 1.0, %v386
  %v388 = vmul.f32 %v385, %v387
  %v389 = vadd.f32 %v385, %v388
  %vm390 = vweird.f32 %v213
  %vm391 = vweird.f32 %v385
  %vm392 = vmor %vm390, %vm391
  %v393 = vsel %vm392, %v385, %v389
  %v394 = vand.u32 2147483647, %v213
  %vm395 = vcmp.eq.f32.partialorder %v394, 8.507059e+37
  %v396 = vand.u32 %v213, 2147483648
  %v397 = vor.u32 1.1754944e-38, %v396
  %v398 = vsel %vm395, %v397, %v393
  %v399 = vrcp.pop %v214
  %v400 = vmul.f32 %v214, %v399
  %v401 = vsub.f32 1.0, %v400
  %v402 = vmul.f32 %v399, %v401
  %v403 = vadd.f32 %v399, %v402
  %vm404 = vweird.f32 %v214
  %vm405 = vweird.f32 %v399
  %vm406 = vmor %vm404, %vm405
  %v407 = vsel %vm406, %v399, %v403
  %v408 = vand.u32 2147483647, %v214
  %vm409 = vcmp.eq.f32.partialorder %v408, 8.507059e+37
  %v410 = vand.u32 %v214, 2147483648
  %v411 = vor.u32 1.1754944e-38, %v410
  %v412 = vsel %vm409, %v411, %v407
  %v413 = vrcp.pop %v215
  %v414 = vmul.f32 %v215, %v413
  %v415 = vsub.f32 1.0, %v414
  %v416 = vmul.f32 %v413, %v415
  %v417 = vadd.f32 %v413, %v416
  %vm418 = vweird.f32 %v215
  %vm419 = vweird.f32 %v413
  %vm420 = vmor %vm418, %vm419
  %v421 = vsel %vm420, %v413, %v417
  %v422 = vand.u32 2147483647, %v215
  %vm423 = vcmp.eq.f32.partialorder %v422, 8.507059e+37
  %v424 = vand.u32 %v215, 2147483648
  %v425 = vor.u32 1.1754944e-38, %v424
  %v426 = vsel %vm423, %v425, %v421
  %v427 = vrcp.pop %v216
  %v428 = vmul.f32 %v216, %v427
  %v429 = vsub.f32 1.0, %v428
  %v430 = vmul.f32 %v427, %v429
  %v431 = vadd.f32 %v427, %v430
  %vm432 = vweird.f32 %v216
  %vm433 = vweird.f32 %v427
  %vm434 = vmor %vm432, %vm433
  %v435 = vsel %vm434, %v427, %v431
  %v436 = vand.u32 2147483647, %v216
  %vm437 = vcmp.eq.f32.partialorder %v436, 8.507059e+37
  %v438 = vand.u32 %v216, 2147483648
  %v439 = vor.u32 1.1754944e-38, %v438
  %v440 = vsel %vm437, %v439, %v435
  %v441 = vmul.f32 %v137, %v230
  %v442 = vmul.f32 %v138, %v244
  %v443 = vmul.f32 %v139, %v258
  %v444 = vmul.f32 %v140, %v272
  %v445 = vmul.f32 %v141, %v286
  %v446 = vmul.f32 %v142, %v300
  %v447 = vmul.f32 %v143, %v314
  %v448 = vmul.f32 %v144, %v328
  %v449 = vmul.f32 %v145, %v342
  %v450 = vmul.f32 %v146, %v356
  %v451 = vmul.f32 %v147, %v370
  %v452 = vmul.f32 %v148, %v384
  %v453 = vmul.f32 %v149, %v398
  %v454 = vmul.f32 %v150, %v412
  %v455 = vmul.f32 %v151, %v426
  %v456 = vmul.f32 %v152, %v440
  %457 = vst.msk [vmem:[%s1] sm:$0xff] %vm40, %v441
  %458 = vst.msk [vmem:[%s1 + $0x8] sm:$0xff] %vm40, %v442
  %459 = vst.msk [vmem:[%s1 + $0x10] sm:$0xff] %vm40, %v443
  %460 = vst.msk [vmem:[%s1 + $0x18] sm:$0xff] %vm40, %v444
  %461 = vst.msk [vmem:[%s1 + $0x20] sm:$0xff] %vm40, %v445
  %462 = vst.msk [vmem:[%s1 + $0x28] sm:$0xff] %vm40, %v446
  %463 = vst.msk [vmem:[%s1 + $0x30] sm:$0xff] %vm40, %v447
  %464 = vst.msk [vmem:[%s1 + $0x38] sm:$0xff] %vm40, %v448
  %465 = vst.msk [vmem:[%s1 + $0x40] sm:$0xff] %vm40, %v449
  %466 = vst.msk [vmem:[%s1 + $0x48] sm:$0xff] %vm40, %v450
  %467 = vst.msk [vmem:[%s1 + $0x50] sm:$0xff] %vm40, %v451
  %468 = vst.msk [vmem:[%s1 + $0x58] sm:$0xff] %vm40, %v452
  %469 = vst.msk [vmem:[%s1 + $0x60] sm:$0xff] %vm40, %v453
  %470 = vst.msk [vmem:[%s1 + $0x68] sm:$0xff] %vm40, %v454
  %471 = vst.msk [vmem:[%s1 + $0x70] sm:$0xff] %vm40, %v455
  %472 = vst.msk [vmem:[%s1 + $0x78] sm:$0xff] %vm40, %v456
  // Predicated region
  $region6: #{tpu_custom_call.1} parent=0 // pred_check
    _
  $region7: #{tpu_custom_call.1} parent=0 // pred_check_branch
    %474 = sbr.rel (0) target = $region9
  $region8: #{tpu_custom_call.1} parent=0 // pred_region
    _
  $region9: #{tpu_custom_call.1} parent=0 // pred_fallthru
    _
  // Predicated region
  $region10: #{tpu_custom_call.1} parent=0 // pred_check
    _
  $region11: #{tpu_custom_call.1} parent=0 // pred_check_branch
    %476 = sbr.rel (0) target = $region13
  $region12: #{tpu_custom_call.1} parent=0 // pred_region
    _
  $region13: #{tpu_custom_call.1} parent=0 // pred_fallthru
    _

</llo_original>
